<compile_context>
chip_gen: v6e
topology: v6e:2x2x1
jax: 0.10.0
libtpu: 0.0.40
codegen_flags: <defaults>
</compile_context>

<pallas_src>
import jax
import jax.numpy as jnp
import numpy as np
from jax import lax
from jax.experimental import pallas as pl
from jax.experimental.pallas import tpu as pltpu

# ---- problem sizes (small, consistent with the module) -----------------------
B = 2              # sbatch
NSQ = 8            # nsq (squeeze channels)
NSQ_HALF = NSQ // 2
NCHA = 16          # CouplingNet hidden channels (ncha % (nsq//2) == 0)
SEMB = 32          # speaker-embedding size
L = 128            # lchunk (lane dimension)
BL = B * L         # batch folded into lanes
KW = 3             # coupling conv kernel width (kernel body hardcodes 3 taps)
R = NCHA // NSQ_HALF

assert KW == 3


# =============================== Pallas kernel ================================

def flow_kernel(h_ref, w_ref, e_ref, wa_ref, ba_ref, w1_ref, b1_ref,
                w2s_ref, b2_ref, selT_ref, oh_ref, ld_ref):
    # ---- fold batch into the lane axis: (B, NSQ, L) -> (NSQ, B*L) ----
    h2d = jnp.concatenate([h_ref[b] for b in range(B)], axis=-1)            # (NSQ, BL)

    # ---- InvConv: 1x1 conv over channels == channel-mixing matmul ----
    hm = jnp.dot(w_ref[...], h2d, preferred_element_type=jnp.float32)       # (NSQ, BL)

    # ---- ActNorm with data-dependent init (first-forward-call semantics) ----
    inv_n = 1.0 / float(BL)
    mean = jnp.sum(hm, axis=1, keepdims=True) * inv_n                       # (NSQ, 1)
    diff = hm - mean                                                        # == hm + m
    var = jnp.sum(diff * diff, axis=1, keepdims=True) * (1.0 / (BL - 1))
    logs = -jnp.log(jnp.sqrt(var) + 1e-7)                                   # log(1/(std+eps))
    hn = jnp.exp(logs) * diff                                               # (NSQ, BL)
    ld_norm = jnp.sum(logs, axis=0, keepdims=True) * float(L)               # (1, 1)

    h1 = hn[:NSQ_HALF, :]                                                   # (NSQ_HALF, BL)
    h2 = hn[NSQ_HALF:, :]

    # ---- hoisted shift masks (zero padding at each per-batch L boundary) ----
    lane_pos = lax.broadcasted_iota(jnp.int32, (NCHA, BL), 1) % L
    mask_m1 = lane_pos != 0          # valid lanes for out[t] = x[t-1]
    mask_p1 = lane_pos != (L - 1)    # valid lanes for out[t] = x[t+1]

    def sh_m1(x):                    # out[t] = x[t-1]  (zero pad, no batch bleed)
        return jnp.where(mask_m1, pltpu.roll(x, shift=1, axis=1), 0.0)

    def sh_p1(x):                    # out[t] = x[t+1]
        return jnp.where(mask_p1, pltpu.roll(x, shift=BL - 1, axis=1), 0.0)

    # ---- grouped-conv channel replication as a 0/1 matmul (MXU) ----
    h1_rep = jnp.dot(e_ref[...], h1, preferred_element_type=jnp.float32)    # (NCHA, BL)

    # ---- per-batch depthwise conv; weights from the speaker embedding,
    #      pre-broadcast along the lane axis in the wrapper ----
    z = (wa_ref[0] * sh_m1(h1_rep)
         + wa_ref[1] * h1_rep
         + wa_ref[2] * sh_p1(h1_rep)
         + ba_ref[...])
    z = jnp.maximum(z, 0.0)                                                 # ReLU

    # ---- 1x1 conv (channel matmul) + ReLU ----
    y = jnp.dot(w1_ref[...], z, preferred_element_type=jnp.float32) + b1_ref[...]
    y = jnp.maximum(y, 0.0)

    # ---- kw conv (NCHA -> NSQ channels) as ONE matmul on stacked shifted copies ----
    ystack = jnp.concatenate([sh_m1(y), y, sh_p1(y)], axis=0)               # (KW*NCHA, BL)
    out = jnp.dot(w2s_ref[...], ystack,
                  preferred_element_type=jnp.float32) + b2_ref[...]         # (NSQ, BL)

    s = jax.nn.sigmoid(out[:NSQ_HALF, :] + 2.0) + 1e-7
    m_shift = out[NSQ_HALF:, :]
    h2n = s * (h2 + m_shift)

    # ---- output: direct sub-ref stores, (NSQ, B*L) -> (B, NSQ, L) ----
    for b in range(B):
        sl = slice(b * L, (b + 1) * L)
        oh_ref[b, :NSQ_HALF, :] = h1[:, sl]
        oh_ref[b, NSQ_HALF:, :] = h2n[:, sl]

    # ---- per-batch coupling logdet via a lane-segmented sum on the MXU ----
    log_s = jnp.log(s)                                                      # (NSQ_HALF, BL)
    ld_c = lax.dot_general(log_s, selT_ref[...],
                           dimension_numbers=(((1,), (1,)), ((), ())),
                           preferred_element_type=jnp.float32)              # (NSQ_HALF, B)
    ld_ref[...] = jnp.sum(ld_c, axis=0, keepdims=True) + ld_norm            # (1, B)


# ============================ parameter construction ===========================

def init_params(key):
    ks = jax.random.split(key, 9)
    # --- InvConv (QR + LU init, faithful to the PyTorch __init__, done in JAX glue) ---
    w0 = jax.random.normal(ks[0], (NSQ, NSQ), jnp.float32)
    q, _ = jnp.linalg.qr(w0)
    p_mat, l_mat, u_mat = jax.scipy.linalg.lu(q)
    w_s_diag = jnp.diag(u_mat)
    params = dict(
        w_p=p_mat,
        w_l=l_mat,
        w_u=jnp.triu(u_mat, 1),
        w_s=jnp.log(1e-7 + jnp.abs(w_s_diag)),
        s_sign=jnp.sign(w_s_diag),
        u_mask=jnp.triu(jnp.ones((NSQ, NSQ), jnp.float32), 1),
    )
    params["l_mask"] = params["u_mask"].T
    params["l_eye"] = jnp.eye(NSQ, dtype=jnp.float32)

    # --- CouplingNet parameters (deterministic synthetic init) ---
    params["adapt_w_w"] = 0.1 * jax.random.normal(ks[1], (NCHA * KW, SEMB), jnp.float32)
    params["adapt_w_b"] = 0.1 * jax.random.normal(ks[2], (NCHA * KW,), jnp.float32)
    params["adapt_b_w"] = 0.1 * jax.random.normal(ks[3], (NCHA, SEMB), jnp.float32)
    params["adapt_b_b"] = 0.1 * jax.random.normal(ks[4], (NCHA,), jnp.float32)
    params["conv1_w"] = 0.1 * jax.random.normal(ks[5], (NCHA, NCHA, 1), jnp.float32)
    params["conv1_b"] = 0.1 * jax.random.normal(ks[6], (NCHA,), jnp.float32)
    # NOTE: the PyTorch module zero-initialises the last conv.  We use small nonzero
    # synthetic values here so the numerical check actually exercises the s/m branch
    # and the coupling-logdet path (the forward math is identical either way).
    params["conv2_w"] = 0.05 * jax.random.normal(ks[7], (2 * NSQ_HALF, NCHA, KW), jnp.float32)
    params["conv2_b"] = 0.05 * jax.random.normal(ks[8], (2 * NSQ_HALF,), jnp.float32)
    return params


def calc_weight(p):
    return p["w_p"] @ (p["w_l"] * p["l_mask"] + p["l_eye"]) @ (
        p["w_u"] * p["u_mask"] + jnp.diag(p["s_sign"] * jnp.exp(p["w_s"])))


# ================================ forward (glue) ===============================

def flow_forward(params, h, emb):
    # --- parameter-only preprocessing (tiny XLA ops that feed the single kernel) ---
    weight = calc_weight(params)                                            # (NSQ, NSQ)
    ld_mixer = jnp.sum(params["w_s"]) * L

    # CouplingNet hyper-network: per-batch depthwise weights / bias from the speaker
    # embedding, broadcast along the lane axis (lane t belongs to batch t // L).
    wa = (emb @ params["adapt_w_w"].T + params["adapt_w_b"]).reshape(B, NCHA, KW)
    ba = emb @ params["adapt_b_w"].T + params["adapt_b_b"]                  # (B, NCHA)
    wa_bcast = jnp.repeat(wa.transpose(2, 1, 0), L, axis=-1)                # (KW, NCHA, B*L)
    ba_bcast = jnp.repeat(ba.T, L, axis=-1)                                 # (NCHA, B*L)

    expand = (jnp.arange(NCHA)[:, None] // R ==
              jnp.arange(NSQ_HALF)[None, :]).astype(jnp.float32)            # (NCHA, NSQ_HALF)
    w1 = params["conv1_w"][:, :, 0]                                         # (NCHA, NCHA)
    b1 = params["conv1_b"][:, None]                                         # (NCHA, 1)
    w2s = params["conv2_w"].transpose(0, 2, 1).reshape(NSQ, KW * NCHA)      # (NSQ, KW*NCHA)
    b2 = params["conv2_b"][:, None]                                         # (NSQ, 1)
    selT = (jnp.arange(B)[:, None] ==
            (jnp.arange(BL)[None, :] // L)).astype(jnp.float32)             # (B, B*L)

    # --- single fused Flow kernel (no grid: whole problem fits one invocation) ---
    h_out, ld_partial = pl.pallas_call(
        flow_kernel,
        out_shape=(jax.ShapeDtypeStruct((B, NSQ, L), jnp.float32),
                   jax.ShapeDtypeStruct((1, B), jnp.float32)),
    )(h, weight, expand, wa_bcast, ba_bcast, w1, b1, w2s, b2, selT)

    logdet = ld_mixer + ld_partial.reshape(B)
    return h_out, logdet


# ============================ pure-JAX reference ===============================

def flow_reference(params, h, emb):
    weight = calc_weight(params)
    hm = jnp.einsum("ij,bjl->bil", weight, h)
    ld_mixer = jnp.sum(params["w_s"]) * L
    flat = hm.transpose(1, 0, 2).reshape(NSQ, -1)
    m = -jnp.mean(flat, axis=1).reshape(1, NSQ, 1)
    logs = jnp.log(1.0 / (jnp.std(flat, axis=1, ddof=1) + 1e-7)).reshape(1, NSQ, 1)
    hn = jnp.exp(logs) * (hm + m)
    ld_norm = jnp.sum(logs) * L
    h1, h2 = hn[:, :NSQ_HALF], hn[:, NSQ_HALF:]
    wa = (emb @ params["adapt_w_w"].T + params["adapt_w_b"]).reshape(B, NCHA, KW)
    ba = emb @ params["adapt_b_w"].T + params["adapt_b_b"]
    h1_rep = jnp.repeat(h1, R, axis=1)
    pad = jnp.pad(h1_rep, ((0, 0), (0, 0), (KW // 2, KW // 2)))
    z = sum(wa[:, :, k:k + 1] * pad[:, :, k:k + L] for k in range(KW)) + ba[..., None]
    z = jnp.maximum(z, 0.0)
    y = jnp.einsum("oc,bcl->bol", params["conv1_w"][:, :, 0], z) + params["conv1_b"][None, :, None]
    y = jnp.maximum(y, 0.0)
    pad_y = jnp.pad(y, ((0, 0), (0, 0), (KW // 2, KW // 2)))
    out = sum(jnp.einsum("oc,bcl->bol", params["conv2_w"][:, :, k], pad_y[:, :, k:k + L])
              for k in range(KW)) + params["conv2_b"][None, :, None]
    s = jax.nn.sigmoid(out[:, :NSQ_HALF] + 2.0) + 1e-7
    mm = out[:, NSQ_HALF:]
    h2n = s * (h2 + mm)
    h_out = jnp.concatenate([h1, h2n], axis=1)
    logdet = ld_mixer + ld_norm + jnp.sum(jnp.log(s), axis=(1, 2))
    return h_out, logdet


# ==================================== main =====================================

if __name__ == "__main__":
    key = jax.random.PRNGKey(0)
    kp, kh, ke = jax.random.split(key, 3)
    params = init_params(kp)
    h = jax.random.normal(kh, (B, NSQ, L), jnp.float32)
    emb = jax.random.normal(ke, (B, SEMB), jnp.float32)

    h_out, logdet = jax.jit(flow_forward)(params, h, emb)
    jax.block_until_ready((h_out, logdet))

    h_ref, ld_ref = flow_reference(params, h, emb)
    np.testing.assert_allclose(np.asarray(h_out), np.asarray(h_ref), rtol=2e-4, atol=2e-4)
    np.testing.assert_allclose(np.asarray(logdet), np.asarray(ld_ref), rtol=2e-4, atol=2e-4)

    print("KERNEL_OK")
</pallas_src>

<mosaic_0001>
module attributes {stable_mosaic.version = 11 : i64} {
  func.func @flow_kernel(%arg0: memref<2x8x128xf32, #tpu.memory_space<vmem>>, %arg1: memref<8x8xf32, #tpu.memory_space<vmem>>, %arg2: memref<16x4xf32, #tpu.memory_space<vmem>>, %arg3: memref<3x16x256xf32, #tpu.memory_space<vmem>>, %arg4: memref<16x256xf32, #tpu.memory_space<vmem>>, %arg5: memref<16x16xf32, #tpu.memory_space<vmem>>, %arg6: memref<16x1xf32, #tpu.memory_space<vmem>>, %arg7: memref<8x48xf32, #tpu.memory_space<vmem>>, %arg8: memref<8x1xf32, #tpu.memory_space<vmem>>, %arg9: memref<2x256xf32, #tpu.memory_space<vmem>>, %arg10: memref<2x8x128xf32, #tpu.memory_space<vmem>>, %arg11: memref<1x2xf32, #tpu.memory_space<vmem>>) attributes {dimension_semantics = [], scalar_prefetch = 0 : i64, scratch_operands = 0 : i64, tpu.core_type = #tpu.core_type<tc>} {
    %c0 = arith.constant 0 : index
    %c0_0 = arith.constant 0 : index
    %c0_1 = arith.constant 0 : index
    %0 = vector.load %arg0[%c0, %c0_0, %c0_1] : memref<2x8x128xf32, #tpu.memory_space<vmem>>, vector<1x8x128xf32>
    %1 = vector.shape_cast %0 : vector<1x8x128xf32> to vector<8x128xf32>
    %c1 = arith.constant 1 : index
    %c0_2 = arith.constant 0 : index
    %c0_3 = arith.constant 0 : index
    %2 = vector.load %arg0[%c1, %c0_2, %c0_3] : memref<2x8x128xf32, #tpu.memory_space<vmem>>, vector<1x8x128xf32>
    %3 = vector.shape_cast %2 : vector<1x8x128xf32> to vector<8x128xf32>
    %4 = tpu.concatenate %1, %3 in 1 : vector<8x128xf32>, vector<8x128xf32> -> vector<8x256xf32>
    %c0_4 = arith.constant 0 : index
    %c0_5 = arith.constant 0 : index
    %5 = vector.load %arg1[%c0_4, %c0_5] : memref<8x8xf32, #tpu.memory_space<vmem>>, vector<8x8xf32>
    %cst = arith.constant dense<0.000000e+00> : vector<8x256xf32>
    %6 = tpu.matmul %5, %4, %cst {dimension_numbers = #tpu.dot_dimension_numbers<[1], [0], [0], [1], [0, 0, 1, 1], [], []>} : vector<8x8xf32>, vector<8x256xf32>, vector<8x256xf32> -> vector<8x256xf32>
    %cst_6 = arith.constant dense<0.000000e+00> : vector<8xf32>
    %7 = vector.multi_reduction <add>, %6, %cst_6 [1] : vector<8x256xf32> to vector<8xf32>
    %8 = vector.shape_cast %7 : vector<8xf32> to vector<8x1xf32>
    %cst_7 = arith.constant 3.906250e-03 : f32
    %9 = vector.broadcast %cst_7 : f32 to vector<8x1xf32>
    %10 = arith.mulf %8, %9 : vector<8x1xf32>
    %11 = vector.broadcast %10 : vector<8x1xf32> to vector<8x256xf32>
    %12 = arith.subf %6, %11 : vector<8x256xf32>
    %13 = arith.mulf %12, %12 : vector<8x256xf32>
    %cst_8 = arith.constant dense<0.000000e+00> : vector<8xf32>
    %14 = vector.multi_reduction <add>, %13, %cst_8 [1] : vector<8x256xf32> to vector<8xf32>
    %15 = vector.shape_cast %14 : vector<8xf32> to vector<8x1xf32>
    %cst_9 = arith.constant 0.00392156886 : f32
    %16 = vector.broadcast %cst_9 : f32 to vector<8x1xf32>
    %17 = arith.mulf %15, %16 : vector<8x1xf32>
    %18 = math.sqrt %17 : vector<8x1xf32>
    %cst_10 = arith.constant 1.000000e-07 : f32
    %19 = vector.broadcast %cst_10 : f32 to vector<8x1xf32>
    %20 = arith.addf %18, %19 : vector<8x1xf32>
    %21 = math.log %20 : vector<8x1xf32>
    %cst_11 = arith.constant 0.000000e+00 : f32
    %22 = vector.broadcast %cst_11 : f32 to vector<8x1xf32>
    %23 = arith.subf %22, %21 : vector<8x1xf32>
    %24 = math.exp %23 : vector<8x1xf32>
    %25 = vector.broadcast %24 : vector<8x1xf32> to vector<8x256xf32>
    %26 = arith.mulf %25, %12 : vector<8x256xf32>
    %cst_12 = arith.constant dense<0.000000e+00> : vector<1xf32>
    %27 = vector.multi_reduction <add>, %23, %cst_12 [0] : vector<8x1xf32> to vector<1xf32>
    %28 = vector.shape_cast %27 : vector<1xf32> to vector<1x1xf32>
    %cst_13 = arith.constant 1.280000e+02 : f32
    %29 = vector.broadcast %cst_13 : f32 to vector<1x1xf32>
    %30 = arith.mulf %28, %29 : vector<1x1xf32>
    %31 = vector.extract_strided_slice %26 {offsets = [0, 0], sizes = [4, 256], strides = [1, 1]} : vector<8x256xf32> to vector<4x256xf32>
    %32 = vector.extract_strided_slice %26 {offsets = [4, 0], sizes = [4, 256], strides = [1, 1]} : vector<8x256xf32> to vector<4x256xf32>
    %33 = tpu.iota {dimensions = array<i32: 1>} : vector<16x256xi32>
    %c128_i32 = arith.constant 128 : i32
    %c0_i32 = arith.constant 0 : i32
    %34 = arith.cmpi eq, %c128_i32, %c0_i32 : i32
    %c1_i32 = arith.constant 1 : i32
    %35 = arith.select %34, %c1_i32, %c128_i32 : i32
    %36 = vector.broadcast %35 : i32 to vector<16x256xi32>
    %37 = arith.remsi %33, %36 : vector<16x256xi32>
    %c0_i32_14 = arith.constant 0 : i32
    %38 = vector.broadcast %c0_i32_14 : i32 to vector<16x256xi32>
    %39 = arith.cmpi ne, %37, %38 : vector<16x256xi32>
    %c0_i32_15 = arith.constant 0 : i32
    %40 = vector.broadcast %c0_i32_15 : i32 to vector<16x256xi32>
    %41 = arith.cmpi slt, %37, %40 : vector<16x256xi32>
    %c0_i32_16 = arith.constant 0 : i32
    %42 = arith.cmpi slt, %35, %c0_i32_16 : i32
    %43 = vector.broadcast %42 : i1 to vector<16x256xi1>
    %44 = vector.broadcast %43 : vector<16x256xi1> to vector<16x256xi1>
    %45 = arith.xori %41, %44 : vector<16x256xi1>
    %46 = arith.andi %45, %39 : vector<16x256xi1>
    %47 = vector.broadcast %35 : i32 to vector<16x256xi32>
    %48 = arith.addi %37, %47 : vector<16x256xi32>
    %49 = arith.select %46, %48, %37 : vector<16x256xi1>, vector<16x256xi32>
    %c0_i32_17 = arith.constant 0 : i32
    %50 = vector.broadcast %c0_i32_17 : i32 to vector<16x256xi32>
    %51 = arith.cmpi ne, %49, %50 : vector<16x256xi32>
    %c127_i32 = arith.constant 127 : i32
    %52 = vector.broadcast %c127_i32 : i32 to vector<16x256xi32>
    %53 = arith.cmpi ne, %49, %52 : vector<16x256xi32>
    %c0_18 = arith.constant 0 : index
    %c0_19 = arith.constant 0 : index
    %54 = vector.load %arg2[%c0_18, %c0_19] : memref<16x4xf32, #tpu.memory_space<vmem>>, vector<16x4xf32>
    %cst_20 = arith.constant dense<0.000000e+00> : vector<16x256xf32>
    %55 = tpu.matmul %54, %31, %cst_20 {dimension_numbers = #tpu.dot_dimension_numbers<[1], [0], [0], [1], [0, 0, 1, 1], [], []>} : vector<16x4xf32>, vector<4x256xf32>, vector<16x256xf32> -> vector<16x256xf32>
    %c0_21 = arith.constant 0 : index
    %c0_22 = arith.constant 0 : index
    %c0_23 = arith.constant 0 : index
    %56 = vector.load %arg3[%c0_21, %c0_22, %c0_23] : memref<3x16x256xf32, #tpu.memory_space<vmem>>, vector<1x16x256xf32>
    %57 = vector.shape_cast %56 : vector<1x16x256xf32> to vector<16x256xf32>
    %c1_i32_24 = arith.constant 1 : i32
    %58 = tpu.dynamic_rotate %55 by %c1_i32_24 dim 1 : vector<16x256xf32>, i32 -> vector<16x256xf32>
    %cst_25 = arith.constant 0.000000e+00 : f32
    %59 = vector.broadcast %cst_25 : f32 to vector<16x256xf32>
    %60 = arith.select %51, %58, %59 : vector<16x256xi1>, vector<16x256xf32>
    %61 = arith.mulf %57, %60 : vector<16x256xf32>
    %c1_26 = arith.constant 1 : index
    %c0_27 = arith.constant 0 : index
    %c0_28 = arith.constant 0 : index
    %62 = vector.load %arg3[%c1_26, %c0_27, %c0_28] : memref<3x16x256xf32, #tpu.memory_space<vmem>>, vector<1x16x256xf32>
    %63 = vector.shape_cast %62 : vector<1x16x256xf32> to vector<16x256xf32>
    %64 = arith.mulf %63, %55 : vector<16x256xf32>
    %65 = arith.addf %61, %64 : vector<16x256xf32>
    %c2 = arith.constant 2 : index
    %c0_29 = arith.constant 0 : index
    %c0_30 = arith.constant 0 : index
    %66 = vector.load %arg3[%c2, %c0_29, %c0_30] : memref<3x16x256xf32, #tpu.memory_space<vmem>>, vector<1x16x256xf32>
    %67 = vector.shape_cast %66 : vector<1x16x256xf32> to vector<16x256xf32>
    %c255_i32 = arith.constant 255 : i32
    %68 = tpu.dynamic_rotate %55 by %c255_i32 dim 1 : vector<16x256xf32>, i32 -> vector<16x256xf32>
    %cst_31 = arith.constant 0.000000e+00 : f32
    %69 = vector.broadcast %cst_31 : f32 to vector<16x256xf32>
    %70 = arith.select %53, %68, %69 : vector<16x256xi1>, vector<16x256xf32>
    %71 = arith.mulf %67, %70 : vector<16x256xf32>
    %72 = arith.addf %65, %71 : vector<16x256xf32>
    %c0_32 = arith.constant 0 : index
    %c0_33 = arith.constant 0 : index
    %73 = vector.load %arg4[%c0_32, %c0_33] : memref<16x256xf32, #tpu.memory_space<vmem>>, vector<16x256xf32>
    %74 = arith.addf %72, %73 : vector<16x256xf32>
    %cst_34 = arith.constant 0.000000e+00 : f32
    %75 = vector.broadcast %cst_34 : f32 to vector<16x256xf32>
    %76 = arith.maximumf %74, %75 : vector<16x256xf32>
    %c0_35 = arith.constant 0 : index
    %c0_36 = arith.constant 0 : index
    %77 = vector.load %arg5[%c0_35, %c0_36] : memref<16x16xf32, #tpu.memory_space<vmem>>, vector<16x16xf32>
    %cst_37 = arith.constant dense<0.000000e+00> : vector<16x256xf32>
    %78 = tpu.matmul %77, %76, %cst_37 {dimension_numbers = #tpu.dot_dimension_numbers<[1], [0], [0], [1], [0, 0, 1, 1], [], []>} : vector<16x16xf32>, vector<16x256xf32>, vector<16x256xf32> -> vector<16x256xf32>
    %c0_38 = arith.constant 0 : index
    %c0_39 = arith.constant 0 : index
    %79 = vector.load %arg6[%c0_38, %c0_39] : memref<16x1xf32, #tpu.memory_space<vmem>>, vector<16x1xf32>
    %80 = vector.broadcast %79 : vector<16x1xf32> to vector<16x256xf32>
    %81 = arith.addf %78, %80 : vector<16x256xf32>
    %cst_40 = arith.constant 0.000000e+00 : f32
    %82 = vector.broadcast %cst_40 : f32 to vector<16x256xf32>
    %83 = arith.maximumf %81, %82 : vector<16x256xf32>
    %c1_i32_41 = arith.constant 1 : i32
    %84 = tpu.dynamic_rotate %83 by %c1_i32_41 dim 1 : vector<16x256xf32>, i32 -> vector<16x256xf32>
    %cst_42 = arith.constant 0.000000e+00 : f32
    %85 = vector.broadcast %cst_42 : f32 to vector<16x256xf32>
    %86 = arith.select %51, %84, %85 : vector<16x256xi1>, vector<16x256xf32>
    %c255_i32_43 = arith.constant 255 : i32
    %87 = tpu.dynamic_rotate %83 by %c255_i32_43 dim 1 : vector<16x256xf32>, i32 -> vector<16x256xf32>
    %cst_44 = arith.constant 0.000000e+00 : f32
    %88 = vector.broadcast %cst_44 : f32 to vector<16x256xf32>
    %89 = arith.select %53, %87, %88 : vector<16x256xi1>, vector<16x256xf32>
    %90 = tpu.concatenate %86, %83, %89 in 0 : vector<16x256xf32>, vector<16x256xf32>, vector<16x256xf32> -> vector<48x256xf32>
    %c0_45 = arith.constant 0 : index
    %c0_46 = arith.constant 0 : index
    %91 = vector.load %arg7[%c0_45, %c0_46] : memref<8x48xf32, #tpu.memory_space<vmem>>, vector<8x48xf32>
    %cst_47 = arith.constant dense<0.000000e+00> : vector<8x256xf32>
    %92 = tpu.matmul %91, %90, %cst_47 {dimension_numbers = #tpu.dot_dimension_numbers<[1], [0], [0], [1], [0, 0, 1, 1], [], []>} : vector<8x48xf32>, vector<48x256xf32>, vector<8x256xf32> -> vector<8x256xf32>
    %c0_48 = arith.constant 0 : index
    %c0_49 = arith.constant 0 : index
    %93 = vector.load %arg8[%c0_48, %c0_49] : memref<8x1xf32, #tpu.memory_space<vmem>>, vector<8x1xf32>
    %94 = vector.broadcast %93 : vector<8x1xf32> to vector<8x256xf32>
    %95 = arith.addf %92, %94 : vector<8x256xf32>
    %96 = vector.extract_strided_slice %95 {offsets = [0, 0], sizes = [4, 256], strides = [1, 1]} : vector<8x256xf32> to vector<4x256xf32>
    %cst_50 = arith.constant 2.000000e+00 : f32
    %97 = vector.broadcast %cst_50 : f32 to vector<4x256xf32>
    %98 = arith.addf %96, %97 : vector<4x256xf32>
    %99 = arith.negf %98 : vector<4x256xf32>
    %100 = math.exp %99 : vector<4x256xf32>
    %cst_51 = arith.constant 1.000000e+00 : f32
    %101 = vector.broadcast %cst_51 : f32 to vector<4x256xf32>
    %102 = arith.addf %101, %100 : vector<4x256xf32>
    %103 = arith.divf %101, %102 : vector<4x256xf32>
    %cst_52 = arith.constant 1.000000e-07 : f32
    %104 = vector.broadcast %cst_52 : f32 to vector<4x256xf32>
    %105 = arith.addf %103, %104 : vector<4x256xf32>
    %106 = vector.extract_strided_slice %95 {offsets = [4, 0], sizes = [4, 256], strides = [1, 1]} : vector<8x256xf32> to vector<4x256xf32>
    %107 = arith.addf %32, %106 : vector<4x256xf32>
    %108 = arith.mulf %105, %107 : vector<4x256xf32>
    %109 = vector.extract_strided_slice %31 {offsets = [0, 0], sizes = [4, 128], strides = [1, 1]} : vector<4x256xf32> to vector<4x128xf32>
    %c0_53 = arith.constant 0 : index
    %c0_54 = arith.constant 0 : index
    %c0_55 = arith.constant 0 : index
    %110 = vector.load %arg10[%c0_53, %c0_54, %c0_55] : memref<2x8x128xf32, #tpu.memory_space<vmem>>, vector<1x4x128xf32>
    %111 = vector.shape_cast %110 : vector<1x4x128xf32> to vector<4x128xf32>
    %112 = vector.shape_cast %109 : vector<4x128xf32> to vector<1x4x128xf32>
    tpu.vector_store %arg10[%c0_53, %c0_54, %c0_55], %112 {strides = array<i32>} : memref<2x8x128xf32, #tpu.memory_space<vmem>>, vector<1x4x128xf32>,
    %113 = vector.extract_strided_slice %108 {offsets = [0, 0], sizes = [4, 128], strides = [1, 1]} : vector<4x256xf32> to vector<4x128xf32>
    %c0_56 = arith.constant 0 : index
    %c4 = arith.constant 4 : index
    %c0_57 = arith.constant 0 : index
    %114 = vector.load %arg10[%c0_56, %c4, %c0_57] : memref<2x8x128xf32, #tpu.memory_space<vmem>>, vector<1x4x128xf32>
    %115 = vector.shape_cast %114 : vector<1x4x128xf32> to vector<4x128xf32>
    %116 = vector.shape_cast %113 : vector<4x128xf32> to vector<1x4x128xf32>
    tpu.vector_store %arg10[%c0_56, %c4, %c0_57], %116 {strides = array<i32>} : memref<2x8x128xf32, #tpu.memory_space<vmem>>, vector<1x4x128xf32>,
    %117 = vector.extract_strided_slice %31 {offsets = [0, 128], sizes = [4, 128], strides = [1, 1]} : vector<4x256xf32> to vector<4x128xf32>
    %c1_58 = arith.constant 1 : index
    %c0_59 = arith.constant 0 : index
    %c0_60 = arith.constant 0 : index
    %118 = vector.load %arg10[%c1_58, %c0_59, %c0_60] : memref<2x8x128xf32, #tpu.memory_space<vmem>>, vector<1x4x128xf32>
    %119 = vector.shape_cast %118 : vector<1x4x128xf32> to vector<4x128xf32>
    %120 = vector.shape_cast %117 : vector<4x128xf32> to vector<1x4x128xf32>
    tpu.vector_store %arg10[%c1_58, %c0_59, %c0_60], %120 {strides = array<i32>} : memref<2x8x128xf32, #tpu.memory_space<vmem>>, vector<1x4x128xf32>,
    %121 = vector.extract_strided_slice %108 {offsets = [0, 128], sizes = [4, 128], strides = [1, 1]} : vector<4x256xf32> to vector<4x128xf32>
    %c1_61 = arith.constant 1 : index
    %c4_62 = arith.constant 4 : index
    %c0_63 = arith.constant 0 : index
    %122 = vector.load %arg10[%c1_61, %c4_62, %c0_63] : memref<2x8x128xf32, #tpu.memory_space<vmem>>, vector<1x4x128xf32>
    %123 = vector.shape_cast %122 : vector<1x4x128xf32> to vector<4x128xf32>
    %124 = vector.shape_cast %121 : vector<4x128xf32> to vector<1x4x128xf32>
    tpu.vector_store %arg10[%c1_61, %c4_62, %c0_63], %124 {strides = array<i32>} : memref<2x8x128xf32, #tpu.memory_space<vmem>>, vector<1x4x128xf32>,
    %125 = math.log %105 : vector<4x256xf32>
    %c0_64 = arith.constant 0 : index
    %c0_65 = arith.constant 0 : index
    %126 = vector.load %arg9[%c0_64, %c0_65] : memref<2x256xf32, #tpu.memory_space<vmem>>, vector<2x256xf32>
    %cst_66 = arith.constant dense<0.000000e+00> : vector<4x2xf32>
    %127 = tpu.matmul %125, %126, %cst_66 {dimension_numbers = #tpu.dot_dimension_numbers<[1], [1], [0], [0], [0, 0, 1, 0], [], []>} : vector<4x256xf32>, vector<2x256xf32>, vector<4x2xf32> -> vector<4x2xf32>
    %cst_67 = arith.constant dense<0.000000e+00> : vector<2xf32>
    %128 = vector.multi_reduction <add>, %127, %cst_67 [0] : vector<4x2xf32> to vector<2xf32>
    %129 = vector.shape_cast %128 : vector<2xf32> to vector<1x2xf32>
    %130 = vector.broadcast %30 : vector<1x1xf32> to vector<1x2xf32>
    %131 = arith.addf %129, %130 : vector<1x2xf32>
    %c0_68 = arith.constant 0 : index
    %c0_69 = arith.constant 0 : index
    %132 = vector.load %arg11[%c0_68, %c0_69] : memref<1x2xf32, #tpu.memory_space<vmem>>, vector<1x2xf32>
    tpu.vector_store %arg11[%c0_68, %c0_69], %131 {strides = array<i32>} : memref<1x2xf32, #tpu.memory_space<vmem>>, vector<1x2xf32>,
    return
  }
}

</mosaic_0001>

<llo_original>
// kernel: flow_forward.1
$region0: #{flow_forward.1}
  #allocation0 [shape = 'u32[]', space=smem, size = 0x4, offset = 0x4, fixed_abs, tag = 'smem constant byte address 0x4 - core index']
  #allocation1 [shape = 'u32[144,128]{1,0:T(1,128)}', space=vmem, size = 0x12000, scoped, tag = 'internal scratch']
  %s0 = inlined_call_operand.vmem [shape: f32[2,8,128], index: 0, kind: input, shape index: {}]
  %s1 = inlined_call_operand.vmem [shape: f32[8,8], index: 1, kind: input, shape index: {}]
  %s2 = inlined_call_operand.vmem [shape: f32[16,4], index: 2, kind: input, shape index: {}]
  %s3 = inlined_call_operand.vmem [shape: f32[3,16,256], index: 3, kind: input, shape index: {}]
  %s4 = inlined_call_operand.vmem [shape: f32[16,256], index: 4, kind: input, shape index: {}]
  %s5 = inlined_call_operand.vmem [shape: f32[16,16], index: 5, kind: input, shape index: {}]
  %s6 = inlined_call_operand.vmem [shape: f32[16,1], index: 6, kind: input, shape index: {}]
  %s7 = inlined_call_operand.vmem [shape: f32[8,48], index: 7, kind: input, shape index: {}]
  %s8 = inlined_call_operand.vmem [shape: f32[8,1], index: 8, kind: input, shape index: {}]
  %s9 = inlined_call_operand.vmem [shape: f32[2,256], index: 9, kind: input, shape index: {}]
  %s10 = inlined_call_operand.hbm [shape: f32[2,8,128], index: 10, kind: output, shape index: {0}]
  %s11 = inlined_call_operand.vmem [shape: f32[1,2], index: 11, kind: output, shape index: {1}]
  %12 = xla_tuple %s10, %s11
  %s13 = sld [smem:[#allocation0]]
  $region58: #{flow_forward.1} parent=0
    _
  %s15 = ssub.s32 1, %s13
  %s16 = scalar_select 0, %s15, %s13
  $region1: #{flow_forward.1} parent=0
    #allocation2 [shape = 'u8[8192]{0}', space=vmem, size = 0x2000, scoped, tag = 'output window, operand 0, single buffered']
    #allocation3 [shape = 's32[1]{0}', space=sflag, size = 0x4, scoped, tag = 'scoped memory for flow_forward.1']
    %17 = vsyncpa [#allocation3], 0
    // Predicated region
    $region2: #{flow_forward.1} parent=1 // pred_check
      _
    $region3: #{flow_forward.1} parent=1 // pred_check_branch
      %19 = sbr.rel (0) target = $region5
    $region4: #{flow_forward.1} parent=1 // pred_region
      _
    $region5: #{flow_forward.1} parent=1 // pred_fallthru
      _
    // Predicated region
    $region6: #{flow_forward.1} parent=1 // pred_check
      _
    $region7: #{flow_forward.1} parent=1 // pred_check_branch
      %21 = sbr.rel (0) target = $region9
    $region8: #{flow_forward.1} parent=1 // pred_region
      _
    $region9: #{flow_forward.1} parent=1 // pred_fallthru
      _
    // Predicated region
    $region10: #{flow_forward.1} parent=1 // pred_check
      _
    $region11: #{flow_forward.1} parent=1 // pred_check_branch
      %23 = sbr.rel (0) target = $region13
    $region12: #{flow_forward.1} parent=1 // pred_region
      _
    $region13: #{flow_forward.1} parent=1 // pred_fallthru
      _
    // Predicated region
    $region14: #{flow_forward.1} parent=1 // pred_check
      _
    $region15: #{flow_forward.1} parent=1 // pred_check_branch
      %25 = sbr.rel (0) target = $region17
    $region16: #{flow_forward.1} parent=1 // pred_region
      _
    $region17: #{flow_forward.1} parent=1 // pred_fallthru
      _
    // Predicated region
    $region18: #{flow_forward.1} parent=1 // pred_check
      _
    $region19: #{flow_forward.1} parent=1 // pred_check_branch
      %27 = sbr.rel (0) target = $region21
    $region20: #{flow_forward.1} parent=1 // pred_region
      _
    $region21: #{flow_forward.1} parent=1 // pred_fallthru
      _
    // Predicated region
    $region22: #{flow_forward.1} parent=1 // pred_check
      _
    $region23: #{flow_forward.1} parent=1 // pred_check_branch
      %29 = sbr.rel (0) target = $region25
    $region24: #{flow_forward.1} parent=1 // pred_region
      _
    $region25: #{flow_forward.1} parent=1 // pred_fallthru
      _
    // Predicated region
    $region26: #{flow_forward.1} parent=1 // pred_check
      _
    $region27: #{flow_forward.1} parent=1 // pred_check_branch
      %31 = sbr.rel (0) target = $region29
    $region28: #{flow_forward.1} parent=1 // pred_region
      _
    $region29: #{flow_forward.1} parent=1 // pred_fallthru
      _
    // Predicated region
    $region30: #{flow_forward.1} parent=1 // pred_check
      _
    $region31: #{flow_forward.1} parent=1 // pred_check_branch
      %33 = sbr.rel (0) target = $region33
    $region32: #{flow_forward.1} parent=1 // pred_region
      _
    $region33: #{flow_forward.1} parent=1 // pred_fallthru
      _
    // Predicated region
    $region34: #{flow_forward.1} parent=1 // pred_check
      _
    $region35: #{flow_forward.1} parent=1 // pred_check_branch
      %35 = sbr.rel (0) target = $region37
    $region36: #{flow_forward.1} parent=1 // pred_region
      _
    $region37: #{flow_forward.1} parent=1 // pred_fallthru
      _
    // Predicated region
    $region38: #{flow_forward.1} parent=1 // pred_check
      _
    $region39: #{flow_forward.1} parent=1 // pred_check_branch
      %37 = sbr.rel (0) target = $region41
    $region40: #{flow_forward.1} parent=1 // pred_region
      _
    $region41: #{flow_forward.1} parent=1 // pred_fallthru
      _
    %v38 = vld [vmem:[%s0] sm:$0xff]
    %s39 = scalar_lea.vmem %s0, 8
    %v40 = vld [vmem:[%s39] sm:$0xff]
    %v41 = vld [vmem:[%s1] sm:$0xff]
    %vm42 = vcmask 64512
    %v44 = vsel %vm42, %v41, 0
    %46 = vmatprep.subr.mxu0 0.0
    %47 = vmatpush1.msra.mxu0 0.0
    %48 = vmatprep.subr.mxu0 0.0
    %49 = vmatpush1.msra.mxu0 0.0
    %50 = vmatprep.subr.mxu0 0.0
    %51 = vmatpush1.msra.mxu0 0.0
    %52 = vmatprep.subr.mxu0 0.0
    %53 = vmatpush1.msra.mxu0 0.0
    %54 = vmatprep.subr.mxu0 0.0
    %55 = vmatpush1.msra.mxu0 0.0
    %56 = vmatprep.subr.mxu0 0.0
    %57 = vmatpush1.msra.mxu0 0.0
    %58 = vmatprep.subr.mxu0 0.0
    %59 = vmatpush1.msra.mxu0 0.0
    %60 = vmatprep.subr.mxu0 0.0
    %61 = vmatpush1.msra.mxu0 0.0
    %62 = vmatprep.subr.mxu0 0.0
    %63 = vmatpush1.msra.mxu0 0.0
    %64 = vmatprep.subr.mxu0 0.0
    %65 = vmatpush1.msra.mxu0 0.0
    %66 = vmatprep.subr.mxu0 0.0
    %67 = vmatpush1.msra.mxu0 0.0
    %68 = vmatprep.subr.mxu0 0.0
    %69 = vmatpush1.msra.mxu0 0.0
    %70 = vmatprep.subr.mxu0 0.0
    %71 = vmatpush1.msra.mxu0 0.0
    %72 = vmatprep.subr.mxu0 0.0
    %73 = vmatpush1.msra.mxu0 0.0
    %74 = vmatprep.subr.mxu0 0.0
    %75 = vmatpush1.msra.mxu0 0.0
    %76 = vmatprep.subr.mxu0 %v40
    %77 = vmatpush1.msra.mxu0 %v38
    %78 = vmatprep.subr.mxu0 0.0
    %79 = vmatpush2.msra.mxu0 0.0
    %80 = vmatprep.subr.mxu0 0.0
    %81 = vmatpush2.msra.mxu0 0.0
    %82 = vmatprep.subr.mxu0 0.0
    %83 = vmatpush2.msra.mxu0 0.0
    %84 = vmatprep.subr.mxu0 0.0
    %85 = vmatpush2.msra.mxu0 0.0
    %86 = vmatprep.subr.mxu0 0.0
    %87 = vmatpush2.msra.mxu0 0.0
    %88 = vmatprep.subr.mxu0 0.0
    %89 = vmatpush2.msra.mxu0 0.0
    %90 = vmatprep.subr.mxu0 0.0
    %91 = vmatpush2.msra.mxu0 0.0
    %92 = vmatprep.subr.mxu0 0.0
    %93 = vmatpush2.msra.mxu0 0.0
    %94 = vmatprep.subr.mxu0 0.0
    %95 = vmatpush2.msra.mxu0 0.0
    %96 = vmatprep.subr.mxu0 0.0
    %97 = vmatpush2.msra.mxu0 0.0
    %98 = vmatprep.subr.mxu0 0.0
    %99 = vmatpush2.msra.mxu0 0.0
    %100 = vmatprep.subr.mxu0 0.0
    %101 = vmatpush2.msra.mxu0 0.0
    %102 = vmatprep.subr.mxu0 0.0
    %103 = vmatpush2.msra.mxu0 0.0
    %104 = vmatprep.subr.mxu0 0.0
    %105 = vmatpush2.msra.mxu0 0.0
    %106 = vmatprep.subr.mxu0 0.0
    %107 = vmatpush2.msra.mxu0 0.0
    %108 = vmatprep.subr.mxu0 0.0
    %109 = vmatpush2.msra.mxu0 0.0
    %110 = vmatprep.mubr.f32.mxu0 0.0
    %111 = vmatmul.mubr.f32.gmra.mxu0 %v44
    %v112 = vpop.f32.mrf.mxu0
    %v113 = vadd.f32 0.0, %v112
    %v114 = vpop.f32.mrf.mxu0
    %v115 = vadd.f32 0.0, %v114
    %116 = vdwg.mxu0
    %v117 = vadd.f32 %v113, %v115
    %118 = vadd.xlane.f32.xlu0 %v117
    %v119 = vpop.xlane.xlu0 %118
    %v120 = vmul.f32 %v119, 0.00390625
    %v121 = vsub.f32 %v113, %v120
    %v122 = vsub.f32 %v115, %v120
    %v123 = vmul.f32 %v121, %v121
    %v124 = vmul.f32 %v122, %v122
    %v125 = vadd.f32 %v123, %v124
    %126 = vadd.xlane.f32.xlu0 %v125
    %v127 = vpop.xlane.xlu0 %126
    %v128 = vmul.f32 %v127, 0.003921569
    %v129 = vrsqrt.pop %v128
    %v130 = vmul.f32 %v128, %v129
    %vm131 = vcmp.eq.f32.partialorder %v128, inf
    %v132 = vsel %vm131, %v128, %v130
    %vm133 = vcmp.eq.f32.partialorder %v128, 0.0
    %v134 = vand.u32 %v128, 2147483648
    %v135 = vsel %vm133, %v134, %v132
    %v136 = vadd.f32 %v135, 1e-07
    %v137 = vlog2.pop %v136
    %v138 = vmul.f32 %v137, 0.6931472
    %v139 = vsub.f32 0.0, %v138
    %v140 = vmul.f32 %v139, 1.442695
    %v141 = vpow.pop %v140
    %v142 = vmul.f32 %v141, %v121
    %v143 = vmul.f32 %v141, %v122
    %v144 = vrot.slane %v139, 4
    %v145 = vadd.f32 %v139, %v144
    %v146 = vrot.slane %v145, 2
    %v147 = vadd.f32 %v145, %v146
    %v148 = vrot.slane %v147, 1
    %v149 = vadd.f32 %v147, %v148
    %v150 = vmul.f32 %v149, 128.0
    %v151 = vlaneseq
    %v152 = vand.u32 %v151, 127
    %v153 = vadd.s32 %v152, 128
    %vm154 = vcmp.lt.s32.totalorder %v152, 0
    %v155 = vsub.s32 0, %v152
    %v156 = vsel %vm154, %v155, %v152
    %v157 = vshrl.u32 %v156, 7
    %v158 = vand.u32 %v156, 127
    %v159 = vsub.s32 0, %v158
    %v160 = vsel %vm154, %v159, %v158
    %vm161 = vcmp.lt.s32.totalorder %v153, 0
    %v162 = vsub.s32 0, %v153
    %v163 = vsel %vm161, %v162, %v153
    %v164 = vshrl.u32 %v163, 7
    %v165 = vand.u32 %v163, 127
    %v166 = vsub.s32 0, %v165
    %v167 = vsel %vm161, %v166, %v165
    %vm168 = vcmp.ne.s32.totalorder %v160, 0
    %vm169 = vcmp.ne.s32.totalorder %v167, 0
    %vm170 = vcmp.lt.s32.totalorder %v160, 0
    %vm171 = vcmp.lt.s32.totalorder %v167, 0
    %vm172 = vmand %vm170, %vm168
    %vm173 = vmand %vm171, %vm169
    %v174 = vadd.s32 %v160, 128
    %v175 = vadd.s32 %v167, 128
    %v176 = vsel %vm172, %v174, %v160
    %v177 = vsel %vm173, %v175, %v167
    %vm178 = vcmp.ne.s32.totalorder %v176, 0
    %vm179 = vcmp.ne.s32.totalorder %v177, 0
    %vm180 = vcmp.ne.s32.totalorder %v176, 127
    %vm181 = vcmp.ne.s32.totalorder %v177, 127
    %v182 = vld [vmem:[%s2] sm:$0xff]
    %v183 = vld [vmem:[%s2 + $0x8] sm:$0xff]
    %vm184 = vcmask 31744
    %v186 = vsel %vm184, %v182, 0
    %v189 = vsel %vm184, %v183, 0
    %vm191 = vcmask 1043456
    %v193 = vsel %vm191, %v142, 0
    %v196 = vsel %vm191, %v143, 0
    %198 = vmatprep.subr.mxu0 0.0
    %199 = vmatpush1.msra.mxu0 0.0
    %200 = vmatprep.subr.mxu0 0.0
    %201 = vmatpush1.msra.mxu0 0.0
    %202 = vmatprep.subr.mxu0 0.0
    %203 = vmatpush1.msra.mxu0 0.0
    %204 = vmatprep.subr.mxu0 0.0
    %205 = vmatpush1.msra.mxu0 0.0
    %206 = vmatprep.subr.mxu0 0.0
    %207 = vmatpush1.msra.mxu0 0.0
    %208 = vmatprep.subr.mxu0 0.0
    %209 = vmatpush1.msra.mxu0 0.0
    %210 = vmatprep.subr.mxu0 0.0
    %211 = vmatpush1.msra.mxu0 0.0
    %212 = vmatprep.subr.mxu0 0.0
    %213 = vmatpush1.msra.mxu0 0.0
    %214 = vmatprep.subr.mxu0 0.0
    %215 = vmatpush1.msra.mxu0 0.0
    %216 = vmatprep.subr.mxu0 0.0
    %217 = vmatpush1.msra.mxu0 0.0
    %218 = vmatprep.subr.mxu0 0.0
    %219 = vmatpush1.msra.mxu0 0.0
    %220 = vmatprep.subr.mxu0 0.0
    %221 = vmatpush1.msra.mxu0 0.0
    %222 = vmatprep.subr.mxu0 0.0
    %223 = vmatpush1.msra.mxu0 0.0
    %224 = vmatprep.subr.mxu0 0.0
    %225 = vmatpush1.msra.mxu0 0.0
    %226 = vmatprep.subr.mxu0 0.0
    %227 = vmatpush1.msra.mxu0 0.0
    %228 = vmatprep.subr.mxu0 %v196
    %229 = vmatpush1.msra.mxu0 %v193
    %230 = vmatprep.subr.mxu0 0.0
    %231 = vmatpush2.msra.mxu0 0.0
    %232 = vmatprep.subr.mxu0 0.0
    %233 = vmatpush2.msra.mxu0 0.0
    %234 = vmatprep.subr.mxu0 0.0
    %235 = vmatpush2.msra.mxu0 0.0
    %236 = vmatprep.subr.mxu0 0.0
    %237 = vmatpush2.msra.mxu0 0.0
    %238 = vmatprep.subr.mxu0 0.0
    %239 = vmatpush2.msra.mxu0 0.0
    %240 = vmatprep.subr.mxu0 0.0
    %241 = vmatpush2.msra.mxu0 0.0
    %242 = vmatprep.subr.mxu0 0.0
    %243 = vmatpush2.msra.mxu0 0.0
    %244 = vmatprep.subr.mxu0 0.0
    %245 = vmatpush2.msra.mxu0 0.0
    %246 = vmatprep.subr.mxu0 0.0
    %247 = vmatpush2.msra.mxu0 0.0
    %248 = vmatprep.subr.mxu0 0.0
    %249 = vmatpush2.msra.mxu0 0.0
    %250 = vmatprep.subr.mxu0 0.0
    %251 = vmatpush2.msra.mxu0 0.0
    %252 = vmatprep.subr.mxu0 0.0
    %253 = vmatpush2.msra.mxu0 0.0
    %254 = vmatprep.subr.mxu0 0.0
    %255 = vmatpush2.msra.mxu0 0.0
    %256 = vmatprep.subr.mxu0 0.0
    %257 = vmatpush2.msra.mxu0 0.0
    %258 = vmatprep.subr.mxu0 0.0
    %259 = vmatpush2.msra.mxu0 0.0
    %260 = vmatprep.subr.mxu0 0.0
    %261 = vmatpush2.msra.mxu0 0.0
    %262 = vmatprep.mubr.f32.mxu0 0.0
    %263 = vmatmul.mubr.f32.gmra.mxu0 %v186
    %v264 = vpop.f32.mrf.mxu0
    %v265 = vadd.f32 0.0, %v264
    %v266 = vpop.f32.mrf.mxu0
    %v267 = vadd.f32 0.0, %v266
    %268 = vmatprep.mubr.f32.mxu0 0.0
    %269 = vmatmul.mubr.f32.gmra.mxu0 %v189
    %v270 = vpop.f32.mrf.mxu0
    %v271 = vadd.f32 0.0, %v270
    %v272 = vpop.f32.mrf.mxu0
    %v273 = vadd.f32 0.0, %v272
    %274 = vdwg.mxu0
    %v275 = vld [vmem:[%s3] sm:$0xff]
    %v276 = vld [vmem:[%s3 + $0x8] sm:$0xff]
    %v277 = vld [vmem:[%s3 + $0x10] sm:$0xff]
    %v278 = vld [vmem:[%s3 + $0x18] sm:$0xff]
    %279 = vrot.lane.b32.xlu0 %v265, 1
    %v280 = vpop.permute.xlu0 %279
    %281 = vrot.lane.b32.xlu0 %v271, 1
    %v282 = vpop.permute.xlu0 %281
    %283 = vrot.lane.b32.xlu0 %v267, 1
    %v284 = vpop.permute.xlu0 %283
    %285 = vrot.lane.b32.xlu0 %v273, 1
    %v286 = vpop.permute.xlu0 %285
    %vm287 = vcmp.lt.s32.totalorder %v152, 1
    %v288 = vsel %vm287, %v280, %v284
    %v289 = vsel %vm287, %v282, %v286
    %v290 = vsel %vm287, %v284, %v280
    %v291 = vsel %vm287, %v286, %v282
    %v292 = vsel %vm178, %v290, 0.0
    %v293 = vsel %vm179, %v288, 0.0
    %v294 = vsel %vm178, %v291, 0.0
    %v295 = vsel %vm179, %v289, 0.0
    %v296 = vmul.f32 %v275, %v292
    %v297 = vmul.f32 %v276, %v293
    %v298 = vmul.f32 %v277, %v294
    %v299 = vmul.f32 %v278, %v295
    %s300 = scalar_lea.vmem %s3, 32
    %v301 = vld [vmem:[%s300] sm:$0xff]
    %v302 = vld [vmem:[%s300 + $0x8] sm:$0xff]
    %v303 = vld [vmem:[%s300 + $0x10] sm:$0xff]
    %v304 = vld [vmem:[%s300 + $0x18] sm:$0xff]
    %v305 = vmul.f32 %v301, %v265
    %v306 = vmul.f32 %v302, %v267
    %v307 = vmul.f32 %v303, %v271
    %v308 = vmul.f32 %v304, %v273
    %v309 = vadd.f32 %v296, %v305
    %v310 = vadd.f32 %v297, %v306
    %v311 = vadd.f32 %v298, %v307
    %v312 = vadd.f32 %v299, %v308
    %s313 = scalar_lea.vmem %s3, 64
    %v314 = vld [vmem:[%s313] sm:$0xff]
    %v315 = vld [vmem:[%s313 + $0x8] sm:$0xff]
    %v316 = vld [vmem:[%s313 + $0x10] sm:$0xff]
    %v317 = vld [vmem:[%s313 + $0x18] sm:$0xff]
    %318 = vrot.lane.b32.xlu0 %v265, 127
    %v319 = vpop.permute.xlu0 %318
    %320 = vrot.lane.b32.xlu0 %v271, 127
    %v321 = vpop.permute.xlu0 %320
    %322 = vrot.lane.b32.xlu0 %v267, 127
    %v323 = vpop.permute.xlu0 %322
    %324 = vrot.lane.b32.xlu0 %v273, 127
    %v325 = vpop.permute.xlu0 %324
    %vm326 = vcmp.lt.s32.totalorder %v152, 127
    %v327 = vsel %vm326, %v319, %v323
    %v328 = vsel %vm326, %v321, %v325
    %v329 = vsel %vm326, %v323, %v319
    %v330 = vsel %vm326, %v325, %v321
    %v331 = vsel %vm180, %v327, 0.0
    %v332 = vsel %vm181, %v329, 0.0
    %v333 = vsel %vm180, %v328, 0.0
    %v334 = vsel %vm181, %v330, 0.0
    %v335 = vmul.f32 %v314, %v331
    %v336 = vmul.f32 %v315, %v332
    %v337 = vmul.f32 %v316, %v333
    %v338 = vmul.f32 %v317, %v334
    %v339 = vadd.f32 %v309, %v335
    %v340 = vadd.f32 %v310, %v336
    %v341 = vadd.f32 %v311, %v337
    %v342 = vadd.f32 %v312, %v338
    %v343 = vld [vmem:[%s4] sm:$0xff]
    %v344 = vld [vmem:[%s4 + $0x8] sm:$0xff]
    %v345 = vld [vmem:[%s4 + $0x10] sm:$0xff]
    %v346 = vld [vmem:[%s4 + $0x18] sm:$0xff]
    %v347 = vadd.f32 %v339, %v343
    %v348 = vadd.f32 %v340, %v344
    %v349 = vadd.f32 %v341, %v345
    %v350 = vadd.f32 %v342, %v346
    %v351 = vmax.f32 %v347, 0.0
    %v352 = vmax.f32 %v348, 0.0
    %v353 = vmax.f32 %v349, 0.0
    %v354 = vmax.f32 %v350, 0.0
    %v355 = vld [vmem:[%s5] sm:$0xff]
    %v356 = vld [vmem:[%s5 + $0x8] sm:$0xff]
    %v357 = vld [vmem:[%s6] sm:$0xff]
    %v358 = vld [vmem:[%s6 + $0x8] sm:$0xff]
    %360 = vset.pattern.permute.xlu0 0
    %361 = vperm.xlu0 %360, %v357
    %v362 = vpop.permute.xlu0 %361
    %365 = vset.pattern.permute.xlu0 0
    %366 = vperm.xlu0 %365, %v358
    %v367 = vpop.permute.xlu0 %366
    %vm369 = vcmask 130048
    %v371 = vsel %vm369, %v355, 0
    %v374 = vsel %vm369, %v356, 0
    %376 = vmatprep.subr.mxu0 0.0
    %377 = vmatpush1.msra.mxu0 0.0
    %378 = vmatprep.subr.mxu0 0.0
    %379 = vmatpush1.msra.mxu0 0.0
    %380 = vmatprep.subr.mxu0 0.0
    %381 = vmatpush1.msra.mxu0 0.0
    %382 = vmatprep.subr.mxu0 0.0
    %383 = vmatpush1.msra.mxu0 0.0
    %384 = vmatprep.subr.mxu0 0.0
    %385 = vmatpush1.msra.mxu0 0.0
    %386 = vmatprep.subr.mxu0 0.0
    %387 = vmatpush1.msra.mxu0 0.0
    %388 = vmatprep.subr.mxu0 0.0
    %389 = vmatpush1.msra.mxu0 0.0
    %390 = vmatprep.subr.mxu0 0.0
    %391 = vmatpush1.msra.mxu0 0.0
    %392 = vmatprep.subr.mxu0 0.0
    %393 = vmatpush1.msra.mxu0 0.0
    %394 = vmatprep.subr.mxu0 0.0
    %395 = vmatpush1.msra.mxu0 0.0
    %396 = vmatprep.subr.mxu0 0.0
    %397 = vmatpush1.msra.mxu0 0.0
    %398 = vmatprep.subr.mxu0 0.0
    %399 = vmatpush1.msra.mxu0 0.0
    %400 = vmatprep.subr.mxu0 0.0
    %401 = vmatpush1.msra.mxu0 0.0
    %402 = vmatprep.subr.mxu0 0.0
    %403 = vmatpush1.msra.mxu0 0.0
    %404 = vmatprep.subr.mxu0 %v354
    %405 = vmatpush1.msra.mxu0 %v353
    %406 = vmatprep.subr.mxu0 %v352
    %407 = vmatpush1.msra.mxu0 %v351
    %408 = vmatprep.subr.mxu0 0.0
    %409 = vmatpush2.msra.mxu0 0.0
    %410 = vmatprep.subr.mxu0 0.0
    %411 = vmatpush2.msra.mxu0 0.0
    %412 = vmatprep.subr.mxu0 0.0
    %413 = vmatpush2.msra.mxu0 0.0
    %414 = vmatprep.subr.mxu0 0.0
    %415 = vmatpush2.msra.mxu0 0.0
    %416 = vmatprep.subr.mxu0 0.0
    %417 = vmatpush2.msra.mxu0 0.0
    %418 = vmatprep.subr.mxu0 0.0
    %419 = vmatpush2.msra.mxu0 0.0
    %420 = vmatprep.subr.mxu0 0.0
    %421 = vmatpush2.msra.mxu0 0.0
    %422 = vmatprep.subr.mxu0 0.0
    %423 = vmatpush2.msra.mxu0 0.0
    %424 = vmatprep.subr.mxu0 0.0
    %425 = vmatpush2.msra.mxu0 0.0
    %426 = vmatprep.subr.mxu0 0.0
    %427 = vmatpush2.msra.mxu0 0.0
    %428 = vmatprep.subr.mxu0 0.0
    %429 = vmatpush2.msra.mxu0 0.0
    %430 = vmatprep.subr.mxu0 0.0
    %431 = vmatpush2.msra.mxu0 0.0
    %432 = vmatprep.subr.mxu0 0.0
    %433 = vmatpush2.msra.mxu0 0.0
    %434 = vmatprep.subr.mxu0 0.0
    %435 = vmatpush2.msra.mxu0 0.0
    %436 = vmatprep.subr.mxu0 0.0
    %437 = vmatpush2.msra.mxu0 0.0
    %438 = vmatprep.subr.mxu0 0.0
    %439 = vmatpush2.msra.mxu0 0.0
    %440 = vmatprep.mubr.f32.mxu0 0.0
    %441 = vmatmul.mubr.f32.gmra.mxu0 %v371
    %v442 = vpop.f32.mrf.mxu0
    %v443 = vadd.f32 %v362, %v442
    %v444 = vpop.f32.mrf.mxu0
    %v445 = vadd.f32 %v362, %v444
    %446 = vmatprep.mubr.f32.mxu0 0.0
    %447 = vmatmul.mubr.f32.gmra.mxu0 %v374
    %v448 = vpop.f32.mrf.mxu0
    %v449 = vadd.f32 %v367, %v448
    %v450 = vpop.f32.mrf.mxu0
    %v451 = vadd.f32 %v367, %v450
    %452 = vdwg.mxu0
    %v453 = vmax.f32 %v443, 0.0
    %v454 = vmax.f32 %v445, 0.0
    %v455 = vmax.f32 %v449, 0.0
    %v456 = vmax.f32 %v451, 0.0
    %457 = vrot.lane.b32.xlu0 %v453, 1
    %v458 = vpop.permute.xlu0 %457
    %459 = vrot.lane.b32.xlu0 %v455, 1
    %v460 = vpop.permute.xlu0 %459
    %461 = vrot.lane.b32.xlu0 %v454, 1
    %v462 = vpop.permute.xlu0 %461
    %463 = vrot.lane.b32.xlu0 %v456, 1
    %v464 = vpop.permute.xlu0 %463
    %v465 = vsel %vm287, %v458, %v462
    %v466 = vsel %vm287, %v460, %v464
    %v467 = vsel %vm287, %v462, %v458
    %v468 = vsel %vm287, %v464, %v460
    %v469 = vsel %vm178, %v467, 0.0
    %v470 = vsel %vm179, %v465, 0.0
    %v471 = vsel %vm178, %v468, 0.0
    %v472 = vsel %vm179, %v466, 0.0
    %473 = vrot.lane.b32.xlu0 %v453, 127
    %v474 = vpop.permute.xlu0 %473
    %475 = vrot.lane.b32.xlu0 %v455, 127
    %v476 = vpop.permute.xlu0 %475
    %477 = vrot.lane.b32.xlu0 %v454, 127
    %v478 = vpop.permute.xlu0 %477
    %479 = vrot.lane.b32.xlu0 %v456, 127
    %v480 = vpop.permute.xlu0 %479
    %v481 = vsel %vm326, %v474, %v478
    %v482 = vsel %vm326, %v476, %v480
    %v483 = vsel %vm326, %v478, %v474
    %v484 = vsel %vm326, %v480, %v476
    %v485 = vsel %vm180, %v481, 0.0
    %v486 = vsel %vm181, %v483, 0.0
    %v487 = vsel %vm180, %v482, 0.0
    %v488 = vsel %vm181, %v484, 0.0
    %v489 = vld [vmem:[%s7] sm:$0xff]
    %v490 = vld [vmem:[%s8] sm:$0xff]
    %492 = vset.pattern.permute.xlu0 0
    %493 = vperm.xlu0 %492, %v490
    %v494 = vpop.permute.xlu0 %493
    %vm496 = vcmask 392192
    %v498 = vsel %vm496, %v489, 0
    %500 = vmatprep.subr.mxu0 0.0
    %501 = vmatpush1.msra.mxu0 0.0
    %502 = vmatprep.subr.mxu0 0.0
    %503 = vmatpush1.msra.mxu0 0.0
    %504 = vmatprep.subr.mxu0 0.0
    %505 = vmatpush1.msra.mxu0 0.0
    %506 = vmatprep.subr.mxu0 0.0
    %507 = vmatpush1.msra.mxu0 0.0
    %508 = vmatprep.subr.mxu0 0.0
    %509 = vmatpush1.msra.mxu0 0.0
    %510 = vmatprep.subr.mxu0 0.0
    %511 = vmatpush1.msra.mxu0 0.0
    %512 = vmatprep.subr.mxu0 0.0
    %513 = vmatpush1.msra.mxu0 0.0
    %514 = vmatprep.subr.mxu0 0.0
    %515 = vmatpush1.msra.mxu0 0.0
    %516 = vmatprep.subr.mxu0 0.0
    %517 = vmatpush1.msra.mxu0 0.0
    %518 = vmatprep.subr.mxu0 0.0
    %519 = vmatpush1.msra.mxu0 0.0
    %520 = vmatprep.subr.mxu0 %v488
    %521 = vmatpush1.msra.mxu0 %v487
    %522 = vmatprep.subr.mxu0 %v486
    %523 = vmatpush1.msra.mxu0 %v485
    %524 = vmatprep.subr.mxu0 %v456
    %525 = vmatpush1.msra.mxu0 %v455
    %526 = vmatprep.subr.mxu0 %v454
    %527 = vmatpush1.msra.mxu0 %v453
    %528 = vmatprep.subr.mxu0 %v472
    %529 = vmatpush1.msra.mxu0 %v471
    %530 = vmatprep.subr.mxu0 %v470
    %531 = vmatpush1.msra.mxu0 %v469
    %532 = vmatprep.subr.mxu0 0.0
    %533 = vmatpush2.msra.mxu0 0.0
    %534 = vmatprep.subr.mxu0 0.0
    %535 = vmatpush2.msra.mxu0 0.0
    %536 = vmatprep.subr.mxu0 0.0
    %537 = vmatpush2.msra.mxu0 0.0
    %538 = vmatprep.subr.mxu0 0.0
    %539 = vmatpush2.msra.mxu0 0.0
    %540 = vmatprep.subr.mxu0 0.0
    %541 = vmatpush2.msra.mxu0 0.0
    %542 = vmatprep.subr.mxu0 0.0
    %543 = vmatpush2.msra.mxu0 0.0
    %544 = vmatprep.subr.mxu0 0.0
    %545 = vmatpush2.msra.mxu0 0.0
    %546 = vmatprep.subr.mxu0 0.0
    %547 = vmatpush2.msra.mxu0 0.0
    %548 = vmatprep.subr.mxu0 0.0
    %549 = vmatpush2.msra.mxu0 0.0
    %550 = vmatprep.subr.mxu0 0.0
    %551 = vmatpush2.msra.mxu0 0.0
    %552 = vmatprep.subr.mxu0 0.0
    %553 = vmatpush2.msra.mxu0 0.0
    %554 = vmatprep.subr.mxu0 0.0
    %555 = vmatpush2.msra.mxu0 0.0
    %556 = vmatprep.subr.mxu0 0.0
    %557 = vmatpush2.msra.mxu0 0.0
    %558 = vmatprep.subr.mxu0 0.0
    %559 = vmatpush2.msra.mxu0 0.0
    %560 = vmatprep.subr.mxu0 0.0
    %561 = vmatpush2.msra.mxu0 0.0
    %562 = vmatprep.subr.mxu0 0.0
    %563 = vmatpush2.msra.mxu0 0.0
    %564 = vmatprep.mubr.f32.mxu0 0.0
    %565 = vmatmul.mubr.f32.gmra.mxu0 %v498
    %v566 = vpop.f32.mrf.mxu0
    %v567 = vadd.f32 %v494, %v566
    %v568 = vpop.f32.mrf.mxu0
    %v569 = vadd.f32 %v494, %v568
    %570 = vdwg.mxu0
    %v571 = vadd.f32 %v567, 2.0
    %v572 = vadd.f32 %v569, 2.0
    %v573 = vxor.u32 %v571, 2147483648
    %v574 = vxor.u32 %v572, 2147483648
    %v575 = vmul.f32 %v573, 1.442695
    %v576 = vpow.pop %v575
    %v577 = vmul.f32 %v574, 1.442695
    %v578 = vpow.pop %v577
    %v579 = vadd.f32 %v576, 1.0
    %v580 = vadd.f32 %v578, 1.0
    %v581 = vrcp.pop %v579
    %v582 = vmul.f32 1.0, %v581
    %v583 = vrcp.pop %v580
    %v584 = vmul.f32 1.0, %v583
    %v585 = vadd.f32 %v582, 1e-07
    %v586 = vadd.f32 %v584, 1e-07
    %v587 = vadd.f32 %v142, %v567
    %v588 = vadd.f32 %v143, %v569
    %v591 = vrot.slane %v587, 4
    %v592 = vrot.slane %v588, 4
    %v595 = vmul.f32 %v585, %v591
    %v596 = vmul.f32 %v586, %v592
    %597 = vst [vmem:[#allocation2] sm:$0xf] %v142
    %598 = vst [vmem:[#allocation2 + $0x4] sm:$0xf] %v595
    %s599 = scalar_lea.vmem [#allocation2], 8
    %600 = vst [vmem:[%s599] sm:$0xf] %v143
    %601 = vst [vmem:[%s599 + $0x4] sm:$0xf] %v596
    %v602 = vlog2.pop %v585
    %v603 = vmul.f32 %v602, 0.6931472
    %v604 = vlog2.pop %v586
    %v605 = vmul.f32 %v604, 0.6931472
    %v606 = vld [vmem:[%s9] sm:$0xf]
    %v609 = vunpack.c.l.s4 1983009808
    %v610 = vunpack.c.0.s8 %v609
    %v611 = vlaneseq
    %v612 = vshrl.u32 %v611, 7
    %v613 = vsub.s32 %v610, %v612
    %v614 = vrot.slane %v606, %v613
    %v615 = vcombine.high %v614, %v614
    %618 = vmatprep.subr.mxu0 0.0
    %619 = vmatpush1.xpose.msra.mxu0 0.0
    %620 = vmatprep.subr.mxu0 0.0
    %621 = vmatpush1.xpose.msra.mxu0 0.0
    %622 = vmatprep.subr.mxu0 0.0
    %623 = vmatpush1.xpose.msra.mxu0 0.0
    %624 = vmatprep.subr.mxu0 0.0
    %625 = vmatpush1.xpose.msra.mxu0 0.0
    %626 = vmatprep.subr.mxu0 0.0
    %627 = vmatpush1.xpose.msra.mxu0 0.0
    %628 = vmatprep.subr.mxu0 0.0
    %629 = vmatpush1.xpose.msra.mxu0 0.0
    %630 = vmatprep.subr.mxu0 0.0
    %631 = vmatpush1.xpose.msra.mxu0 0.0
    %632 = vmatprep.subr.mxu0 0.0
    %633 = vmatpush1.xpose.msra.mxu0 0.0
    %634 = vmatprep.subr.mxu0 0.0
    %635 = vmatpush1.xpose.msra.mxu0 0.0
    %636 = vmatprep.subr.mxu0 0.0
    %637 = vmatpush1.xpose.msra.mxu0 0.0
    %638 = vmatprep.subr.mxu0 0.0
    %639 = vmatpush1.xpose.msra.mxu0 0.0
    %640 = vmatprep.subr.mxu0 0.0
    %641 = vmatpush1.xpose.msra.mxu0 0.0
    %642 = vmatprep.subr.mxu0 0.0
    %643 = vmatpush1.xpose.msra.mxu0 0.0
    %644 = vmatprep.subr.mxu0 0.0
    %645 = vmatpush1.xpose.msra.mxu0 0.0
    %646 = vmatprep.subr.mxu0 0.0
    %647 = vmatpush1.xpose.msra.mxu0 0.0
    %648 = vmatprep.subr.mxu0 %v615
    %649 = vmatpush1.xpose.msra.mxu0 %v614
    %650 = vmatprep.subr.mxu0 0.0
    %651 = vmatpush2.xpose.msra.mxu0 0.0
    %652 = vmatprep.subr.mxu0 0.0
    %653 = vmatpush2.xpose.msra.mxu0 0.0
    %654 = vmatprep.subr.mxu0 0.0
    %655 = vmatpush2.xpose.msra.mxu0 0.0
    %656 = vmatprep.subr.mxu0 0.0
    %657 = vmatpush2.xpose.msra.mxu0 0.0
    %658 = vmatprep.subr.mxu0 0.0
    %659 = vmatpush2.xpose.msra.mxu0 0.0
    %660 = vmatprep.subr.mxu0 0.0
    %661 = vmatpush2.xpose.msra.mxu0 0.0
    %662 = vmatprep.subr.mxu0 0.0
    %663 = vmatpush2.xpose.msra.mxu0 0.0
    %664 = vmatprep.subr.mxu0 0.0
    %665 = vmatpush2.xpose.msra.mxu0 0.0
    %666 = vmatprep.subr.mxu0 0.0
    %667 = vmatpush2.xpose.msra.mxu0 0.0
    %668 = vmatprep.subr.mxu0 0.0
    %669 = vmatpush2.xpose.msra.mxu0 0.0
    %670 = vmatprep.subr.mxu0 0.0
    %671 = vmatpush2.xpose.msra.mxu0 0.0
    %672 = vmatprep.subr.mxu0 0.0
    %673 = vmatpush2.xpose.msra.mxu0 0.0
    %674 = vmatprep.subr.mxu0 0.0
    %675 = vmatpush2.xpose.msra.mxu0 0.0
    %676 = vmatprep.subr.mxu0 0.0
    %677 = vmatpush2.xpose.msra.mxu0 0.0
    %678 = vmatprep.subr.mxu0 0.0
    %679 = vmatpush2.xpose.msra.mxu0 0.0
    %680 = vmatprep.subr.mxu0 0.0
    %681 = vmatpush2.xpose.msra.mxu0 0.0
    %682 = vmatprep.mubr.f32.mxu0 %v605
    %683 = vmatmul.mubr.f32.gmra.mxu0 %v603
    %v684 = vpop.f32.mrf.mxu0
    %v685 = vadd.f32 0.0, %v684
    %v686 = vpop.f32.mrf.mxu0
    %687 = vdwg.mxu0
    %vm688 = vcmask 11264
    %v689 = vsel %vm688, %v685, 0.0
    %v690 = vrot.slane %v689, 4
    %v691 = vadd.f32 %v689, %v690
    %v692 = vrot.slane %v691, 2
    %v693 = vadd.f32 %v691, %v692
    %v694 = vrot.slane %v693, 1
    %v695 = vadd.f32 %v693, %v694
    %v696 = vadd.f32 %v695, %v150
    %vm697 = vcmask 8192
    %698 = vst.msk [vmem:[%s11] sm:$0x1] %vm697, %v696
    // Predicated region
    $region42: #{flow_forward.1} parent=1 // pred_check
      _
    $region43: #{flow_forward.1} parent=1 // pred_check_branch
      %700 = sbr.rel (0) target = $region45
    $region44: #{flow_forward.1} parent=1 // pred_region
      %s702 = ssub.s32 256, 256
      %703 = vsyncadd [#allocation3], %s702
      %s704 = sshll.u32 [#allocation2], 4
      %s705 = int_to_ptr.vmem [resolvable:$true] %s704
      %710 = dma.vmem_to_hbm [thread:$0]  %s705, 256, %s10, [#allocation3], 128, 128, 8
    $region45: #{flow_forward.1} parent=1 // pred_fallthru
      _
    // Predicated region
    $region46: #{flow_forward.1} parent=1 // pred_check
      _
    $region47: #{flow_forward.1} parent=1 // pred_check_branch
      %712 = sbr.rel (0) target = $region49
    $region48: #{flow_forward.1} parent=1 // pred_region
      _
    $region49: #{flow_forward.1} parent=1 // pred_fallthru
      _
    // Predicated region
    $region50: #{flow_forward.1} parent=1 // pred_check
      _
    $region51: #{flow_forward.1} parent=1 // pred_check_branch
      %714 = sbr.rel (0) target = $region53
    $region52: #{flow_forward.1} parent=1 // pred_region
      %715 = dma.done [#allocation3], 256
    $region53: #{flow_forward.1} parent=1 // pred_fallthru
      _
    // Predicated region
    $region54: #{flow_forward.1} parent=1 // pred_check
      _
    $region55: #{flow_forward.1} parent=1 // pred_check_branch
      %717 = sbr.rel (0) target = $region57
    $region56: #{flow_forward.1} parent=1 // pred_region
      _
    $region57: #{flow_forward.1} parent=1 // pred_fallthru
      _
    %718 = vsyncpa [#allocation3], 1

</llo_original>
